<compile_context>
chip_gen: v7x
topology: tpu7x:2x2x1
jax: 0.10.0
libtpu: 0.0.40
codegen_flags: <defaults>
</compile_context>

<pallas_src>
import jax
import jax.numpy as jnp
import numpy as np
from jax.experimental import pallas as pl
from jax.experimental.pallas import tpu as pltpu


# ------------------------------ fused kernel --------------------------------

def _round_up(a, b):
    return ((a + b - 1) // b) * b


def _sigmoid(z):
    # One EUP transcendental (tanh) per element; exact.
    return 0.5 * jnp.tanh(0.5 * z) + 0.5


def _lenet_kernel(x_ref, w1_ref, b1_ref, w2_ref, b2_ref, wf_ref, bf_ref, o_ref):
    # x_ref: (Bt, 256) bf16 = channel-0 16x16 image flattened row-major.
    x = x_ref[...]

    # Conv1(1->6, k=5) + bias + sigmoid as a dense matmul.
    # Column layout: tap*256 + (c*36 + py*6 + px), tap = dy*2+dx, i.e. conv-1
    # output pixel (2*py+dy, 2*px+dx); columns >=216 inside a tap are pad.
    z1 = jnp.dot(x, w1_ref[...], preferred_element_type=jnp.float32) + b1_ref[...]
    h1 = _sigmoid(z1)                                               # (Bt, 1024) f32

    # MaxPool1 2x2: elementwise max of the four 256-lane tap slices.
    p1 = jnp.maximum(jnp.maximum(h1[:, 0:256], h1[:, 256:512]),
                     jnp.maximum(h1[:, 512:768], h1[:, 768:1024]))  # (Bt, 256)

    # Conv2(6->16, k=5) + bias + sigmoid as a dense 128-lane matmul.
    # Column layout: rep*64 + tap*16 + co, tap = oy*2+ox, rep in {0,1}.
    z2 = jnp.dot(p1.astype(jnp.bfloat16), w2_ref[...],
                 preferred_element_type=jnp.float32) + b2_ref[...]
    h2 = _sigmoid(z2)                                               # (Bt, 128)

    # MaxPool2 2x2 over the four taps via lane rotations (XLU slot).  Lanes
    # 64:128 replicate lanes 0:64, so lanes 0:16 hold the max over all four taps
    # regardless of the rotate direction.
    m = jnp.maximum(h2, pltpu.roll(h2, shift=96, axis=1))
    feat = jnp.maximum(m, pltpu.roll(m, shift=112, axis=1))         # lanes 0:16 real

    # Linear(16 -> 10), lane-dense 128-wide output; fc-weight rows 16:128 and
    # columns 10:128 are zero, so pad lanes drop out.
    o_ref[...] = (jnp.dot(feat.astype(jnp.bfloat16), wf_ref[...],
                          preferred_element_type=jnp.float32)
                  + bf_ref[...]).astype(o_ref.dtype)


# ------------------------------ host wrapper ---------------------------------

def lenet_forward(x, params, *, max_block_batch=512):
    """x: (N, C, 16, 16) NCHW; only channel 0 is used (as in the PyTorch module)."""
    n, c, h, w = x.shape
    assert h == 16 and w == 16, "LeNet with Linear(16,10) requires 16x16 input"

    # View as (N, C*256): channel 0 occupies columns 0:256, so the input BlockSpec
    # DMAs only channel 0.  Ship it as bf16 to halve the recurring HBM read.
    xf = x.reshape(n, c * 256).astype(jnp.bfloat16)

    gran = 16                                       # bf16 native sublane tile rows
    nb = _round_up(n, gran)
    bt = min(_round_up(max_block_batch, gran), nb)  # batch tile
    if nb >= 2 * gran and nb <= bt:
        # Keep >=2 grid steps so ("parallel",) shards across both v7x TensorCores.
        bt = _round_up(pl.cdiv(nb, 2), gran)
    padded = _round_up(nb, bt)
    if padded != n:
        xf = jnp.pad(xf, ((0, padded - n), (0, 0)))

    out = pl.pallas_call(
        _lenet_kernel,
        out_shape=jax.ShapeDtypeStruct((padded, 128), jnp.float32),
        grid=(padded // bt,),
        in_specs=[
            pl.BlockSpec((bt, 256), lambda i: (i, 0)),     # channel-0 pixels (bf16)
            pl.BlockSpec((256, 1024), lambda i: (0, 0)),   # conv1 dense weight (bf16)
            pl.BlockSpec((1, 1024), lambda i: (0, 0)),     # conv1 bias (f32)
            pl.BlockSpec((256, 128), lambda i: (0, 0)),    # conv2 dense weight (bf16)
            pl.BlockSpec((1, 128), lambda i: (0, 0)),      # conv2 bias (f32)
            pl.BlockSpec((128, 128), lambda i: (0, 0)),    # fc weight (bf16, padded)
            pl.BlockSpec((1, 128), lambda i: (0, 0)),      # fc bias (f32, padded)
        ],
        out_specs=pl.BlockSpec((bt, 128), lambda i: (i, 0)),
        compiler_params=pltpu.CompilerParams(
            dimension_semantics=("parallel",),
            vmem_limit_bytes=32 * 1024 * 1024,
        ),
    )(xf, params["w1d"], params["b1d"], params["w2d"], params["b2d"],
      params["wfc"], params["bfc"])
    return out[:n, :10]


# --------------------- parameter construction (host side) --------------------

def init_raw_params(key):
    """PyTorch-shaped LeNet parameters, deterministically initialized in-script."""
    k1, k2, k3, k4, k5, k6 = jax.random.split(key, 6)
    return {
        "w1": jax.random.normal(k1, (6, 1, 5, 5), jnp.float32) * 0.2,   # Conv2d(1,6,5)
        "b1": jax.random.normal(k2, (6,), jnp.float32) * 0.1,
        "w2": jax.random.normal(k3, (16, 6, 5, 5), jnp.float32) * 0.1,  # Conv2d(6,16,5)
        "b2": jax.random.normal(k4, (16,), jnp.float32) * 0.1,
        "wf": jax.random.normal(k5, (10, 16), jnp.float32) * 0.1,       # Linear(16,10)
        "bf": jax.random.normal(k6, (10,), jnp.float32) * 0.1,
    }


def build_kernel_params(raw):
    """Bake both convs into dense, pool-tap-major, lane-aligned matmul weights."""
    w1 = np.asarray(raw["w1"]); b1 = np.asarray(raw["b1"])
    w2 = np.asarray(raw["w2"]); b2 = np.asarray(raw["b2"])
    wf = np.asarray(raw["wf"]); bf = np.asarray(raw["bf"])

    # Conv1: flat 16x16 image (row index y*16+x) -> 1024 columns laid out as
    # tap*256 + (c*36 + py*6 + px), tap = dy*2+dx, output pixel (2*py+dy, 2*px+dx).
    W1 = np.zeros((256, 1024), np.float32)
    B1 = np.zeros((1, 1024), np.float32)
    for cc in range(6):
        for Y in range(12):
            for X in range(12):
                col = ((Y % 2) * 2 + (X % 2)) * 256 + cc * 36 + (Y // 2) * 6 + (X // 2)
                B1[0, col] = b1[cc]
                for ky in range(5):
                    for kx in range(5):
                        W1[(Y + ky) * 16 + (X + kx), col] = w1[cc, 0, ky, kx]

    # Conv2: pooled-1 vector (row index ci*36 + py*6 + px; rows >=216 are pad and
    # stay zero) -> 128 columns laid out as rep*64 + tap*16 + co, tap = oy*2+ox.
    # rep=1 replicates rep=0 so the pool-2 rolls are rotate-direction agnostic.
    W2 = np.zeros((256, 128), np.float32)
    B2 = np.zeros((1, 128), np.float32)
    for rep in range(2):
        for co in range(16):
            for oy in range(2):
                for ox in range(2):
                    col = rep * 64 + (oy * 2 + ox) * 16 + co
                    B2[0, col] = b2[co]
                    for ci in range(6):
                        for ky in range(5):
                            for kx in range(5):
                                W2[ci * 36 + (oy + ky) * 6 + (ox + kx), col] = \
                                    w2[co, ci, ky, kx]

    # FC: lane-dense (128,128); rows 16:128 zero out pool-2 pad lanes, columns
    # 10:128 are output padding (sliced off on the host).
    WF = np.zeros((128, 128), np.float32)
    WF[:16, :10] = wf.T
    BF = np.zeros((1, 128), np.float32)
    BF[0, :10] = bf

    return {
        "w1d": jnp.asarray(W1, dtype=jnp.bfloat16),
        "b1d": jnp.asarray(B1),
        "w2d": jnp.asarray(W2, dtype=jnp.bfloat16),
        "b2d": jnp.asarray(B2),
        "wfc": jnp.asarray(WF, dtype=jnp.bfloat16),
        "bfc": jnp.asarray(BF),
    }


# --------------------------- plain-JAX reference -----------------------------

def reference_forward(x, raw):
    img = x[:, 0:1, :, :].astype(jnp.float32)                     # img[:,0].unsqueeze(1)
    y = jax.lax.conv_general_dilated(img, raw["w1"], (1, 1), "VALID",
                                     dimension_numbers=("NCHW", "OIHW", "NCHW"))
    y = jax.nn.sigmoid(y + raw["b1"][None, :, None, None])
    y = jax.lax.reduce_window(y, -jnp.inf, jax.lax.max, (1, 1, 2, 2), (1, 1, 2, 2), "VALID")
    y = jax.lax.conv_general_dilated(y, raw["w2"], (1, 1), "VALID",
                                     dimension_numbers=("NCHW", "OIHW", "NCHW"))
    y = jax.nn.sigmoid(y + raw["b2"][None, :, None, None])
    y = jax.lax.reduce_window(y, -jnp.inf, jax.lax.max, (1, 1, 2, 2), (1, 1, 2, 2), "VALID")
    feat = y.reshape(x.shape[0], -1)                               # (N, 16)
    return feat @ raw["wf"].T + raw["bf"]


if __name__ == "__main__":
    key = jax.random.PRNGKey(0)
    kx, kp = jax.random.split(key)
    # batch=2, channels=4, spatial=16 (only channel 0 is used, as in the module)
    x = jax.random.normal(kx, (2, 4, 16, 16), jnp.float32)
    raw = init_raw_params(kp)
    params = build_kernel_params(raw)

    out = jax.block_until_ready(lenet_forward(x, params))
    assert out.shape == (2, 10) and out.dtype == jnp.float32

    ref = jax.block_until_ready(reference_forward(x, raw))
    assert jnp.max(jnp.abs(out - ref)) < 3e-2, "kernel deviates from reference"

    print("KERNEL_OK")
</pallas_src>

<mosaic_0001>
module attributes {stable_mosaic.version = 11 : i64} {
  func.func @_lenet_kernel(%arg0: i32, %arg1: memref<16x256xbf16, #tpu.memory_space<vmem>>, %arg2: memref<256x1024xbf16, #tpu.memory_space<vmem>>, %arg3: memref<1x1024xf32, #tpu.memory_space<vmem>>, %arg4: memref<256x128xbf16, #tpu.memory_space<vmem>>, %arg5: memref<1x128xf32, #tpu.memory_space<vmem>>, %arg6: memref<128x128xbf16, #tpu.memory_space<vmem>>, %arg7: memref<1x128xf32, #tpu.memory_space<vmem>>, %arg8: memref<16x128xf32, #tpu.memory_space<vmem>>) attributes {dimension_semantics = [#tpu.dimension_semantics<parallel>], iteration_bounds = array<i64: 1>, scalar_prefetch = 0 : i64, scratch_operands = 0 : i64, tpu.core_type = #tpu.core_type<tc>, window_params = [{transform_indices = @transform_0, window_bounds = array<i64: 16, 256>}, {pipeline_mode = #tpu.pipeline_mode<synchronous>, transform_indices = @transform_1, window_bounds = array<i64: 256, 1024>}, {pipeline_mode = #tpu.pipeline_mode<synchronous>, transform_indices = @transform_2, window_bounds = array<i64: 1, 1024>}, {pipeline_mode = #tpu.pipeline_mode<synchronous>, transform_indices = @transform_3, window_bounds = array<i64: 256, 128>}, {pipeline_mode = #tpu.pipeline_mode<synchronous>, transform_indices = @transform_4, window_bounds = array<i64: 1, 128>}, {pipeline_mode = #tpu.pipeline_mode<synchronous>, transform_indices = @transform_5, window_bounds = array<i64: 128, 128>}, {pipeline_mode = #tpu.pipeline_mode<synchronous>, transform_indices = @transform_6, window_bounds = array<i64: 1, 128>}, {transform_indices = @transform_7, window_bounds = array<i64: 16, 128>}]} {
    %c0 = arith.constant 0 : index
    %c0_0 = arith.constant 0 : index
    %0 = vector.load %arg1[%c0, %c0_0] : memref<16x256xbf16, #tpu.memory_space<vmem>>, vector<16x256xbf16>
    %c0_1 = arith.constant 0 : index
    %c0_2 = arith.constant 0 : index
    %1 = vector.load %arg2[%c0_1, %c0_2] : memref<256x1024xbf16, #tpu.memory_space<vmem>>, vector<256x1024xbf16>
    %cst = arith.constant dense<0.000000e+00> : vector<16x1024xf32>
    %2 = tpu.matmul %0, %1, %cst {dimension_numbers = #tpu.dot_dimension_numbers<[1], [0], [0], [1], [0, 0, 1, 1], [], []>} : vector<16x256xbf16>, vector<256x1024xbf16>, vector<16x1024xf32> -> vector<16x1024xf32>
    %c0_3 = arith.constant 0 : index
    %c0_4 = arith.constant 0 : index
    %3 = vector.load %arg3[%c0_3, %c0_4] : memref<1x1024xf32, #tpu.memory_space<vmem>>, vector<1x1024xf32>
    %4 = vector.broadcast %3 : vector<1x1024xf32> to vector<16x1024xf32>
    %5 = arith.addf %2, %4 : vector<16x1024xf32>
    %cst_5 = arith.constant 5.000000e-01 : f32
    %6 = vector.broadcast %cst_5 : f32 to vector<16x1024xf32>
    %7 = arith.mulf %6, %5 : vector<16x1024xf32>
    %8 = math.tanh %7 : vector<16x1024xf32>
    %cst_6 = arith.constant 5.000000e-01 : f32
    %9 = vector.broadcast %cst_6 : f32 to vector<16x1024xf32>
    %10 = arith.mulf %9, %8 : vector<16x1024xf32>
    %cst_7 = arith.constant 5.000000e-01 : f32
    %11 = vector.broadcast %cst_7 : f32 to vector<16x1024xf32>
    %12 = arith.addf %10, %11 : vector<16x1024xf32>
    %13 = vector.extract_strided_slice %12 {offsets = [0, 0], sizes = [16, 256], strides = [1, 1]} : vector<16x1024xf32> to vector<16x256xf32>
    %14 = vector.extract_strided_slice %12 {offsets = [0, 256], sizes = [16, 256], strides = [1, 1]} : vector<16x1024xf32> to vector<16x256xf32>
    %15 = arith.maximumf %13, %14 : vector<16x256xf32>
    %16 = vector.extract_strided_slice %12 {offsets = [0, 512], sizes = [16, 256], strides = [1, 1]} : vector<16x1024xf32> to vector<16x256xf32>
    %17 = vector.extract_strided_slice %12 {offsets = [0, 768], sizes = [16, 256], strides = [1, 1]} : vector<16x1024xf32> to vector<16x256xf32>
    %18 = arith.maximumf %16, %17 : vector<16x256xf32>
    %19 = arith.maximumf %15, %18 : vector<16x256xf32>
    %20 = arith.truncf %19 : vector<16x256xf32> to vector<16x256xbf16>
    %c0_8 = arith.constant 0 : index
    %c0_9 = arith.constant 0 : index
    %21 = vector.load %arg4[%c0_8, %c0_9] : memref<256x128xbf16, #tpu.memory_space<vmem>>, vector<256x128xbf16>
    %cst_10 = arith.constant dense<0.000000e+00> : vector<16x128xf32>
    %22 = tpu.matmul %20, %21, %cst_10 {dimension_numbers = #tpu.dot_dimension_numbers<[1], [0], [0], [1], [0, 0, 1, 1], [], []>} : vector<16x256xbf16>, vector<256x128xbf16>, vector<16x128xf32> -> vector<16x128xf32>
    %c0_11 = arith.constant 0 : index
    %c0_12 = arith.constant 0 : index
    %23 = vector.load %arg5[%c0_11, %c0_12] : memref<1x128xf32, #tpu.memory_space<vmem>>, vector<1x128xf32>
    %24 = vector.broadcast %23 : vector<1x128xf32> to vector<16x128xf32>
    %25 = arith.addf %22, %24 : vector<16x128xf32>
    %cst_13 = arith.constant 5.000000e-01 : f32
    %26 = vector.broadcast %cst_13 : f32 to vector<16x128xf32>
    %27 = arith.mulf %26, %25 : vector<16x128xf32>
    %28 = math.tanh %27 : vector<16x128xf32>
    %cst_14 = arith.constant 5.000000e-01 : f32
    %29 = vector.broadcast %cst_14 : f32 to vector<16x128xf32>
    %30 = arith.mulf %29, %28 : vector<16x128xf32>
    %cst_15 = arith.constant 5.000000e-01 : f32
    %31 = vector.broadcast %cst_15 : f32 to vector<16x128xf32>
    %32 = arith.addf %30, %31 : vector<16x128xf32>
    %c96_i32 = arith.constant 96 : i32
    %33 = tpu.dynamic_rotate %32 by %c96_i32 dim 1 : vector<16x128xf32>, i32 -> vector<16x128xf32>
    %34 = arith.maximumf %32, %33 : vector<16x128xf32>
    %c112_i32 = arith.constant 112 : i32
    %35 = tpu.dynamic_rotate %34 by %c112_i32 dim 1 : vector<16x128xf32>, i32 -> vector<16x128xf32>
    %36 = arith.maximumf %34, %35 : vector<16x128xf32>
    %37 = arith.truncf %36 : vector<16x128xf32> to vector<16x128xbf16>
    %c0_16 = arith.constant 0 : index
    %c0_17 = arith.constant 0 : index
    %38 = vector.load %arg6[%c0_16, %c0_17] : memref<128x128xbf16, #tpu.memory_space<vmem>>, vector<128x128xbf16>
    %cst_18 = arith.constant dense<0.000000e+00> : vector<16x128xf32>
    %39 = tpu.matmul %37, %38, %cst_18 {dimension_numbers = #tpu.dot_dimension_numbers<[1], [0], [0], [1], [0, 0, 1, 1], [], []>} : vector<16x128xbf16>, vector<128x128xbf16>, vector<16x128xf32> -> vector<16x128xf32>
    %c0_19 = arith.constant 0 : index
    %c0_20 = arith.constant 0 : index
    %40 = vector.load %arg7[%c0_19, %c0_20] : memref<1x128xf32, #tpu.memory_space<vmem>>, vector<1x128xf32>
    %41 = vector.broadcast %40 : vector<1x128xf32> to vector<16x128xf32>
    %42 = arith.addf %39, %41 : vector<16x128xf32>
    %c0_21 = arith.constant 0 : index
    %c0_22 = arith.constant 0 : index
    %43 = vector.load %arg8[%c0_21, %c0_22] : memref<16x128xf32, #tpu.memory_space<vmem>>, vector<16x128xf32>
    tpu.vector_store %arg8[%c0_21, %c0_22], %42 {strides = array<i32>} : memref<16x128xf32, #tpu.memory_space<vmem>>, vector<16x128xf32>,
    return
  }
  func.func @transform_0(%arg0: i32) -> (i32, i32) {
    %c0_i32 = arith.constant 0 : i32
    %c0_i32_0 = arith.constant 0 : i32
    return %arg0, %c0_i32 : i32, i32
  }
  func.func @transform_1(%arg0: i32) -> (i32, i32) {
    %c0_i32 = arith.constant 0 : i32
    %c0_i32_0 = arith.constant 0 : i32
    %c0_i32_1 = arith.constant 0 : i32
    return %c0_i32, %c0_i32_0 : i32, i32
  }
  func.func @transform_2(%arg0: i32) -> (i32, i32) {
    %c0_i32 = arith.constant 0 : i32
    %c0_i32_0 = arith.constant 0 : i32
    %c0_i32_1 = arith.constant 0 : i32
    return %c0_i32, %c0_i32_0 : i32, i32
  }
  func.func @transform_3(%arg0: i32) -> (i32, i32) {
    %c0_i32 = arith.constant 0 : i32
    %c0_i32_0 = arith.constant 0 : i32
    %c0_i32_1 = arith.constant 0 : i32
    return %c0_i32, %c0_i32_0 : i32, i32
  }
  func.func @transform_4(%arg0: i32) -> (i32, i32) {
    %c0_i32 = arith.constant 0 : i32
    %c0_i32_0 = arith.constant 0 : i32
    %c0_i32_1 = arith.constant 0 : i32
    return %c0_i32, %c0_i32_0 : i32, i32
  }
  func.func @transform_5(%arg0: i32) -> (i32, i32) {
    %c0_i32 = arith.constant 0 : i32
    %c0_i32_0 = arith.constant 0 : i32
    %c0_i32_1 = arith.constant 0 : i32
    return %c0_i32, %c0_i32_0 : i32, i32
  }
  func.func @transform_6(%arg0: i32) -> (i32, i32) {
    %c0_i32 = arith.constant 0 : i32
    %c0_i32_0 = arith.constant 0 : i32
    %c0_i32_1 = arith.constant 0 : i32
    return %c0_i32, %c0_i32_0 : i32, i32
  }
  func.func @transform_7(%arg0: i32) -> (i32, i32) {
    %c0_i32 = arith.constant 0 : i32
    %c0_i32_0 = arith.constant 0 : i32
    return %arg0, %c0_i32 : i32, i32
  }
}

</mosaic_0001>

<llo_original>
// kernel: tpu_custom_call.1
$region0: #{tpu_custom_call.1}
  #allocation0 [shape = 'u32[]', space=smem, size = 0x4, offset = 0x4, fixed_abs, tag = 'smem constant byte address 0x4 - core index']
  #allocation1 [shape = 'u32[144,128]{1,0:T(1,128)}', space=vmem, size = 0x12000, scoped, tag = 'internal scratch']
  %s0 = inlined_call_operand.hbm [shape: bf16[16,1024], index: 0, kind: input, shape index: {}]
  %s1 = inlined_call_operand.hbm [shape: bf16[256,1024], index: 1, kind: input, shape index: {}]
  %s2 = inlined_call_operand.hbm [shape: f32[1,1024], index: 2, kind: input, shape index: {}]
  %s3 = inlined_call_operand.hbm [shape: bf16[256,128], index: 3, kind: input, shape index: {}]
  %s4 = inlined_call_operand.vmem [shape: f32[1,128], index: 4, kind: input, shape index: {}]
  %s5 = inlined_call_operand.hbm [shape: bf16[128,128], index: 5, kind: input, shape index: {}]
  %s6 = inlined_call_operand.vmem [shape: f32[1,128], index: 6, kind: input, shape index: {}]
  %s7 = inlined_call_operand.hbm [shape: f32[16,128], index: 7, kind: output, shape index: {}]
  %s8 = sld [smem:[#allocation0]]
  $region58: #{tpu_custom_call.1} parent=0
    _
  %s10 = ssub.s32 1, %s8
  %s11 = scalar_select 0, %s10, %s8
  $region1: #{tpu_custom_call.1} parent=0
    #allocation2 [shape = 'u8[8192]{0}', space=vmem, size = 0x2000, scoped, tag = 'input window, operand 0, single buffered']
    #allocation3 [shape = 's32[1]{0}', space=sflag, size = 0x4, scoped, tag = 'scoped memory for tpu_custom_call.1']
    #allocation4 [shape = 's32[1]{0}', space=sflag, size = 0x4, scoped, tag = 'scoped memory for tpu_custom_call.1']
    #allocation5 [shape = 'u8[524288]{0}', space=vmem, size = 0x80000, scoped, tag = 'input window, operand 1, single buffered']
    #allocation6 [shape = 's32[1]{0}', space=sflag, size = 0x4, scoped, tag = 'scoped memory for tpu_custom_call.1']
    #allocation7 [shape = 'u8[4096]{0}', space=vmem, size = 0x1000, scoped, tag = 'input window, operand 2, single buffered']
    #allocation8 [shape = 'u8[65536]{0}', space=vmem, size = 0x10000, scoped, tag = 'input window, operand 3, single buffered']
    #allocation9 [shape = 's32[1]{0}', space=sflag, size = 0x4, scoped, tag = 'scoped memory for tpu_custom_call.1']
    #allocation10 [shape = 'u8[32768]{0}', space=vmem, size = 0x8000, scoped, tag = 'input window, operand 5, single buffered']
    #allocation11 [shape = 'u8[8192]{0}', space=vmem, size = 0x2000, scoped, tag = 'output window, operand 0, single buffered']
    %12 = vsyncpa [#allocation3], 0
    %13 = vsyncpa [#allocation6], 0
    %14 = vsyncpa [#allocation9], 0
    %15 = vsyncpa [#allocation4], 0
    // Predicated region
    $region2: #{tpu_custom_call.1} parent=1 // pred_check
      _
    $region3: #{tpu_custom_call.1} parent=1 // pred_check_branch
      %17 = sbr.rel (0) target = $region5
    $region4: #{tpu_custom_call.1} parent=1 // pred_region
      %s19 = ssub.s32 256, 256
      %20 = vsyncadd [#allocation3], %s19
      %s21 = sshll.u32 [#allocation2], 4
      %s22 = int_to_ptr.vmem [resolvable:$true] %s21
      %27 = dma.hbm_to_vmem [thread:$0]  %s0, 256, %s22, [#allocation3], 512, 128, 8
    $region5: #{tpu_custom_call.1} parent=1 // pred_fallthru
      _
    // Predicated region
    $region6: #{tpu_custom_call.1} parent=1 // pred_check
      _
    $region7: #{tpu_custom_call.1} parent=1 // pred_check_branch
      %29 = sbr.rel (0) target = $region9
    $region8: #{tpu_custom_call.1} parent=1 // pred_region
      %s31 = ssub.s32 16384, 16384
      %32 = vsyncadd [#allocation6], %s31
      %s33 = sshll.u32 [#allocation5], 4
      %s34 = int_to_ptr.vmem [resolvable:$true] %s33
      %39 = dma.hbm_to_vmem [thread:$0]  %s1, 16384, %s34, [#allocation6], 512, 512, 32
    $region9: #{tpu_custom_call.1} parent=1 // pred_fallthru
      _
    // Predicated region
    $region10: #{tpu_custom_call.1} parent=1 // pred_check
      _
    $region11: #{tpu_custom_call.1} parent=1 // pred_check_branch
      %41 = sbr.rel (0) target = $region13
    $region12: #{tpu_custom_call.1} parent=1 // pred_region
      %s43 = ssub.s32 128, 128
      %44 = vsyncadd [#allocation6], %s43
      %s46 = sshll.u32 [#allocation7], 4
      %s47 = int_to_ptr.vmem [resolvable:$true] %s46
      %49 = dma.hbm_to_vmem [thread:$0]  %s2, 128, %s47, [#allocation6]
    $region13: #{tpu_custom_call.1} parent=1 // pred_fallthru
      _
    // Predicated region
    $region14: #{tpu_custom_call.1} parent=1 // pred_check
      _
    $region15: #{tpu_custom_call.1} parent=1 // pred_check_branch
      %51 = sbr.rel (0) target = $region17
    $region16: #{tpu_custom_call.1} parent=1 // pred_region
      %s53 = ssub.s32 2048, 2048
      %54 = vsyncadd [#allocation9], %s53
      %s55 = sshll.u32 [#allocation8], 4
      %s56 = int_to_ptr.vmem [resolvable:$true] %s55
      %61 = dma.hbm_to_vmem [thread:$0]  %s3, 2048, %s56, [#allocation9], 64, 64, 4
    $region17: #{tpu_custom_call.1} parent=1 // pred_fallthru
      _
    // Predicated region
    $region18: #{tpu_custom_call.1} parent=1 // pred_check
      _
    $region19: #{tpu_custom_call.1} parent=1 // pred_check_branch
      %63 = sbr.rel (0) target = $region21
    $region20: #{tpu_custom_call.1} parent=1 // pred_region
      _
    $region21: #{tpu_custom_call.1} parent=1 // pred_fallthru
      _
    // Predicated region
    $region22: #{tpu_custom_call.1} parent=1 // pred_check
      _
    $region23: #{tpu_custom_call.1} parent=1 // pred_check_branch
      %65 = sbr.rel (0) target = $region25
    $region24: #{tpu_custom_call.1} parent=1 // pred_region
      %s67 = ssub.s32 1024, 1024
      %68 = vsyncadd [#allocation9], %s67
      %s69 = sshll.u32 [#allocation10], 4
      %s70 = int_to_ptr.vmem [resolvable:$true] %s69
      %75 = dma.hbm_to_vmem [thread:$0]  %s5, 1024, %s70, [#allocation9], 64, 64, 4
    $region25: #{tpu_custom_call.1} parent=1 // pred_fallthru
      _
    // Predicated region
    $region26: #{tpu_custom_call.1} parent=1 // pred_check
      _
    $region27: #{tpu_custom_call.1} parent=1 // pred_check_branch
      %77 = sbr.rel (0) target = $region29
    $region28: #{tpu_custom_call.1} parent=1 // pred_region
      _
    $region29: #{tpu_custom_call.1} parent=1 // pred_fallthru
      _
    // Predicated region
    $region30: #{tpu_custom_call.1} parent=1 // pred_check
      _
    $region31: #{tpu_custom_call.1} parent=1 // pred_check_branch
      %79 = sbr.rel (0) target = $region33
    $region32: #{tpu_custom_call.1} parent=1 // pred_region
      %80 = dma.done [#allocation3], 256
    $region33: #{tpu_custom_call.1} parent=1 // pred_fallthru
      _
    // Predicated region
    $region34: #{tpu_custom_call.1} parent=1 // pred_check
      _
    $region35: #{tpu_custom_call.1} parent=1 // pred_check_branch
      %82 = sbr.rel (0) target = $region37
    $region36: #{tpu_custom_call.1} parent=1 // pred_region
      %83 = dma.done [#allocation6], 16384
    $region37: #{tpu_custom_call.1} parent=1 // pred_fallthru
      _
    // Predicated region
    $region38: #{tpu_custom_call.1} parent=1 // pred_check
      _
    $region39: #{tpu_custom_call.1} parent=1 // pred_check_branch
      %85 = sbr.rel (0) target = $region41
    $region40: #{tpu_custom_call.1} parent=1 // pred_region
      %86 = dma.done [#allocation6], 128
    $region41: #{tpu_custom_call.1} parent=1 // pred_fallthru
      _
    // Predicated region
    $region42: #{tpu_custom_call.1} parent=1 // pred_check
      _
    $region43: #{tpu_custom_call.1} parent=1 // pred_check_branch
      %88 = sbr.rel (0) target = $region45
    $region44: #{tpu_custom_call.1} parent=1 // pred_region
      %89 = dma.done [#allocation9], 2048
    $region45: #{tpu_custom_call.1} parent=1 // pred_fallthru
      _
    // Predicated region
    $region46: #{tpu_custom_call.1} parent=1 // pred_check
      _
    $region47: #{tpu_custom_call.1} parent=1 // pred_check_branch
      %91 = sbr.rel (0) target = $region49
    $region48: #{tpu_custom_call.1} parent=1 // pred_region
      %92 = dma.done [#allocation9], 1024
    $region49: #{tpu_custom_call.1} parent=1 // pred_fallthru
      _
    %v94 = vld [vmem:[#allocation2] sm:$0xff]
    %v95 = vld [vmem:[#allocation2 + $0x8] sm:$0xff]
    %v96 = vld [vmem:[#allocation5] sm:$0xff]
    %v97 = vld [vmem:[#allocation5 + $0x8] sm:$0xff]
    %v98 = vld [vmem:[#allocation5 + $0x10] sm:$0xff]
    %v99 = vld [vmem:[#allocation5 + $0x18] sm:$0xff]
    %v100 = vld [vmem:[#allocation5 + $0x20] sm:$0xff]
    %v101 = vld [vmem:[#allocation5 + $0x28] sm:$0xff]
    %v102 = vld [vmem:[#allocation5 + $0x30] sm:$0xff]
    %v103 = vld [vmem:[#allocation5 + $0x38] sm:$0xff]
    %v104 = vld [vmem:[#allocation5 + $0x40] sm:$0xff]
    %v105 = vld [vmem:[#allocation5 + $0x48] sm:$0xff]
    %v106 = vld [vmem:[#allocation5 + $0x50] sm:$0xff]
    %v107 = vld [vmem:[#allocation5 + $0x58] sm:$0xff]
    %v108 = vld [vmem:[#allocation5 + $0x60] sm:$0xff]
    %v109 = vld [vmem:[#allocation5 + $0x68] sm:$0xff]
    %v110 = vld [vmem:[#allocation5 + $0x70] sm:$0xff]
    %v111 = vld [vmem:[#allocation5 + $0x78] sm:$0xff]
    %v112 = vld [vmem:[#allocation5 + $0x80] sm:$0xff]
    %v113 = vld [vmem:[#allocation5 + $0x88] sm:$0xff]
    %v114 = vld [vmem:[#allocation5 + $0x90] sm:$0xff]
    %v115 = vld [vmem:[#allocation5 + $0x98] sm:$0xff]
    %v116 = vld [vmem:[#allocation5 + $0xa0] sm:$0xff]
    %v117 = vld [vmem:[#allocation5 + $0xa8] sm:$0xff]
    %v118 = vld [vmem:[#allocation5 + $0xb0] sm:$0xff]
    %v119 = vld [vmem:[#allocation5 + $0xb8] sm:$0xff]
    %v120 = vld [vmem:[#allocation5 + $0xc0] sm:$0xff]
    %v121 = vld [vmem:[#allocation5 + $0xc8] sm:$0xff]
    %v122 = vld [vmem:[#allocation5 + $0xd0] sm:$0xff]
    %v123 = vld [vmem:[#allocation5 + $0xd8] sm:$0xff]
    %v124 = vld [vmem:[#allocation5 + $0xe0] sm:$0xff]
    %v125 = vld [vmem:[#allocation5 + $0xe8] sm:$0xff]
    %v126 = vld [vmem:[#allocation5 + $0xf0] sm:$0xff]
    %v127 = vld [vmem:[#allocation5 + $0xf8] sm:$0xff]
    %v128 = vld [vmem:[#allocation5 + $0x100] sm:$0xff]
    %v129 = vld [vmem:[#allocation5 + $0x108] sm:$0xff]
    %v130 = vld [vmem:[#allocation5 + $0x110] sm:$0xff]
    %v131 = vld [vmem:[#allocation5 + $0x118] sm:$0xff]
    %v132 = vld [vmem:[#allocation5 + $0x120] sm:$0xff]
    %v133 = vld [vmem:[#allocation5 + $0x128] sm:$0xff]
    %v134 = vld [vmem:[#allocation5 + $0x130] sm:$0xff]
    %v135 = vld [vmem:[#allocation5 + $0x138] sm:$0xff]
    %v136 = vld [vmem:[#allocation5 + $0x140] sm:$0xff]
    %v137 = vld [vmem:[#allocation5 + $0x148] sm:$0xff]
    %v138 = vld [vmem:[#allocation5 + $0x150] sm:$0xff]
    %v139 = vld [vmem:[#allocation5 + $0x158] sm:$0xff]
    %v140 = vld [vmem:[#allocation5 + $0x160] sm:$0xff]
    %v141 = vld [vmem:[#allocation5 + $0x168] sm:$0xff]
    %v142 = vld [vmem:[#allocation5 + $0x170] sm:$0xff]
    %v143 = vld [vmem:[#allocation5 + $0x178] sm:$0xff]
    %v144 = vld [vmem:[#allocation5 + $0x180] sm:$0xff]
    %v145 = vld [vmem:[#allocation5 + $0x188] sm:$0xff]
    %v146 = vld [vmem:[#allocation5 + $0x190] sm:$0xff]
    %v147 = vld [vmem:[#allocation5 + $0x198] sm:$0xff]
    %v148 = vld [vmem:[#allocation5 + $0x1a0] sm:$0xff]
    %v149 = vld [vmem:[#allocation5 + $0x1a8] sm:$0xff]
    %v150 = vld [vmem:[#allocation5 + $0x1b0] sm:$0xff]
    %v151 = vld [vmem:[#allocation5 + $0x1b8] sm:$0xff]
    %v152 = vld [vmem:[#allocation5 + $0x1c0] sm:$0xff]
    %v153 = vld [vmem:[#allocation5 + $0x1c8] sm:$0xff]
    %v154 = vld [vmem:[#allocation5 + $0x1d0] sm:$0xff]
    %v155 = vld [vmem:[#allocation5 + $0x1d8] sm:$0xff]
    %v156 = vld [vmem:[#allocation5 + $0x1e0] sm:$0xff]
    %v157 = vld [vmem:[#allocation5 + $0x1e8] sm:$0xff]
    %v158 = vld [vmem:[#allocation5 + $0x1f0] sm:$0xff]
    %v159 = vld [vmem:[#allocation5 + $0x1f8] sm:$0xff]
    %v160 = vld [vmem:[#allocation5 + $0x200] sm:$0xff]
    %v161 = vld [vmem:[#allocation5 + $0x208] sm:$0xff]
    %v162 = vld [vmem:[#allocation5 + $0x210] sm:$0xff]
    %v163 = vld [vmem:[#allocation5 + $0x218] sm:$0xff]
    %v164 = vld [vmem:[#allocation5 + $0x220] sm:$0xff]
    %v165 = vld [vmem:[#allocation5 + $0x228] sm:$0xff]
    %v166 = vld [vmem:[#allocation5 + $0x230] sm:$0xff]
    %v167 = vld [vmem:[#allocation5 + $0x238] sm:$0xff]
    %v168 = vld [vmem:[#allocation5 + $0x240] sm:$0xff]
    %v169 = vld [vmem:[#allocation5 + $0x248] sm:$0xff]
    %v170 = vld [vmem:[#allocation5 + $0x250] sm:$0xff]
    %v171 = vld [vmem:[#allocation5 + $0x258] sm:$0xff]
    %v172 = vld [vmem:[#allocation5 + $0x260] sm:$0xff]
    %v173 = vld [vmem:[#allocation5 + $0x268] sm:$0xff]
    %v174 = vld [vmem:[#allocation5 + $0x270] sm:$0xff]
    %v175 = vld [vmem:[#allocation5 + $0x278] sm:$0xff]
    %v176 = vld [vmem:[#allocation5 + $0x280] sm:$0xff]
    %v177 = vld [vmem:[#allocation5 + $0x288] sm:$0xff]
    %v178 = vld [vmem:[#allocation5 + $0x290] sm:$0xff]
    %v179 = vld [vmem:[#allocation5 + $0x298] sm:$0xff]
    %v180 = vld [vmem:[#allocation5 + $0x2a0] sm:$0xff]
    %v181 = vld [vmem:[#allocation5 + $0x2a8] sm:$0xff]
    %v182 = vld [vmem:[#allocation5 + $0x2b0] sm:$0xff]
    %v183 = vld [vmem:[#allocation5 + $0x2b8] sm:$0xff]
    %v184 = vld [vmem:[#allocation5 + $0x2c0] sm:$0xff]
    %v185 = vld [vmem:[#allocation5 + $0x2c8] sm:$0xff]
    %v186 = vld [vmem:[#allocation5 + $0x2d0] sm:$0xff]
    %v187 = vld [vmem:[#allocation5 + $0x2d8] sm:$0xff]
    %v188 = vld [vmem:[#allocation5 + $0x2e0] sm:$0xff]
    %v189 = vld [vmem:[#allocation5 + $0x2e8] sm:$0xff]
    %v190 = vld [vmem:[#allocation5 + $0x2f0] sm:$0xff]
    %v191 = vld [vmem:[#allocation5 + $0x2f8] sm:$0xff]
    %v192 = vld [vmem:[#allocation5 + $0x300] sm:$0xff]
    %v193 = vld [vmem:[#allocation5 + $0x308] sm:$0xff]
    %v194 = vld [vmem:[#allocation5 + $0x310] sm:$0xff]
    %v195 = vld [vmem:[#allocation5 + $0x318] sm:$0xff]
    %v196 = vld [vmem:[#allocation5 + $0x320] sm:$0xff]
    %v197 = vld [vmem:[#allocation5 + $0x328] sm:$0xff]
    %v198 = vld [vmem:[#allocation5 + $0x330] sm:$0xff]
    %v199 = vld [vmem:[#allocation5 + $0x338] sm:$0xff]
    %v200 = vld [vmem:[#allocation5 + $0x340] sm:$0xff]
    %v201 = vld [vmem:[#allocation5 + $0x348] sm:$0xff]
    %v202 = vld [vmem:[#allocation5 + $0x350] sm:$0xff]
    %v203 = vld [vmem:[#allocation5 + $0x358] sm:$0xff]
    %v204 = vld [vmem:[#allocation5 + $0x360] sm:$0xff]
    %v205 = vld [vmem:[#allocation5 + $0x368] sm:$0xff]
    %v206 = vld [vmem:[#allocation5 + $0x370] sm:$0xff]
    %v207 = vld [vmem:[#allocation5 + $0x378] sm:$0xff]
    %v208 = vld [vmem:[#allocation5 + $0x380] sm:$0xff]
    %v209 = vld [vmem:[#allocation5 + $0x388] sm:$0xff]
    %v210 = vld [vmem:[#allocation5 + $0x390] sm:$0xff]
    %v211 = vld [vmem:[#allocation5 + $0x398] sm:$0xff]
    %v212 = vld [vmem:[#allocation5 + $0x3a0] sm:$0xff]
    %v213 = vld [vmem:[#allocation5 + $0x3a8] sm:$0xff]
    %v214 = vld [vmem:[#allocation5 + $0x3b0] sm:$0xff]
    %v215 = vld [vmem:[#allocation5 + $0x3b8] sm:$0xff]
    %v216 = vld [vmem:[#allocation5 + $0x3c0] sm:$0xff]
    %v217 = vld [vmem:[#allocation5 + $0x3c8] sm:$0xff]
    %v218 = vld [vmem:[#allocation5 + $0x3d0] sm:$0xff]
    %v219 = vld [vmem:[#allocation5 + $0x3d8] sm:$0xff]
    %v220 = vld [vmem:[#allocation5 + $0x3e0] sm:$0xff]
    %v221 = vld [vmem:[#allocation5 + $0x3e8] sm:$0xff]
    %v222 = vld [vmem:[#allocation5 + $0x3f0] sm:$0xff]
    %v223 = vld [vmem:[#allocation5 + $0x3f8] sm:$0xff]
    %v224 = vld [vmem:[#allocation7] sm:$0xff]
    %v226 = vlaneseq
    %v227 = vshrl.u32 %v226, 7
    %v228 = vsub.s32 0, %v227
    %v229 = vrot.slane %v224, %v228
    %v230 = vlaneseq
    %v231 = vshrl.u32 %v230, 7
    %v232 = vsub.s32 1, %v231
    %v233 = vrot.slane %v224, %v232
    %v234 = vlaneseq
    %v235 = vshrl.u32 %v234, 7
    %v236 = vsub.s32 2, %v235
    %v237 = vrot.slane %v224, %v236
    %v238 = vlaneseq
    %v239 = vshrl.u32 %v238, 7
    %v240 = vsub.s32 3, %v239
    %v241 = vrot.slane %v224, %v240
    %v242 = vlaneseq
    %v243 = vshrl.u32 %v242, 7
    %v244 = vsub.s32 4, %v243
    %v245 = vrot.slane %v224, %v244
    %v246 = vlaneseq
    %v247 = vshrl.u32 %v246, 7
    %v248 = vsub.s32 5, %v247
    %v249 = vrot.slane %v224, %v248
    %v250 = vlaneseq
    %v251 = vshrl.u32 %v250, 7
    %v252 = vsub.s32 6, %v251
    %v253 = vrot.slane %v224, %v252
    %v254 = vlaneseq
    %v255 = vshrl.u32 %v254, 7
    %v256 = vsub.s32 7, %v255
    %v257 = vrot.slane %v224, %v256
    %v268 = vunpack.c.l.b16 %v94
    %v269 = vunpack.c.h.b16 %v94
    %v270 = vunpack.c.l.b16 %v95
    %v271 = vunpack.c.h.b16 %v95
    %v272 = vpack.c.b16 %v270, %v268
    %v273 = vpack.c.b16 %v271, %v269
    %v404 = vunpack.c.l.b16 %v96
    %v405 = vunpack.c.h.b16 %v96
    %v406 = vunpack.c.l.b16 %v97
    %v407 = vunpack.c.h.b16 %v97
    %v408 = vunpack.c.l.b16 %v98
    %v409 = vunpack.c.h.b16 %v98
    %v410 = vunpack.c.l.b16 %v99
    %v411 = vunpack.c.h.b16 %v99
    %v412 = vunpack.c.l.b16 %v100
    %v413 = vunpack.c.h.b16 %v100
    %v414 = vunpack.c.l.b16 %v101
    %v415 = vunpack.c.h.b16 %v101
    %v416 = vunpack.c.l.b16 %v102
    %v417 = vunpack.c.h.b16 %v102
    %v418 = vunpack.c.l.b16 %v103
    %v419 = vunpack.c.h.b16 %v103
    %v420 = vunpack.c.l.b16 %v104
    %v421 = vunpack.c.h.b16 %v104
    %v422 = vunpack.c.l.b16 %v105
    %v423 = vunpack.c.h.b16 %v105
    %v424 = vunpack.c.l.b16 %v106
    %v425 = vunpack.c.h.b16 %v106
    %v426 = vunpack.c.l.b16 %v107
    %v427 = vunpack.c.h.b16 %v107
    %v428 = vunpack.c.l.b16 %v108
    %v429 = vunpack.c.h.b16 %v108
    %v430 = vunpack.c.l.b16 %v109
    %v431 = vunpack.c.h.b16 %v109
    %v432 = vunpack.c.l.b16 %v110
    %v433 = vunpack.c.h.b16 %v110
    %v434 = vunpack.c.l.b16 %v111
    %v435 = vunpack.c.h.b16 %v111
    %v436 = vunpack.c.l.b16 %v112
    %v437 = vunpack.c.h.b16 %v112
    %v438 = vunpack.c.l.b16 %v113
    %v439 = vunpack.c.h.b16 %v113
    %v440 = vunpack.c.l.b16 %v114
    %v441 = vunpack.c.h.b16 %v114
    %v442 = vunpack.c.l.b16 %v115
    %v443 = vunpack.c.h.b16 %v115
    %v444 = vunpack.c.l.b16 %v116
    %v445 = vunpack.c.h.b16 %v116
    %v446 = vunpack.c.l.b16 %v117
    %v447 = vunpack.c.h.b16 %v117
    %v448 = vunpack.c.l.b16 %v118
    %v449 = vunpack.c.h.b16 %v118
    %v450 = vunpack.c.l.b16 %v119
    %v451 = vunpack.c.h.b16 %v119
    %v452 = vunpack.c.l.b16 %v120
    %v453 = vunpack.c.h.b16 %v120
    %v454 = vunpack.c.l.b16 %v121
    %v455 = vunpack.c.h.b16 %v121
    %v456 = vunpack.c.l.b16 %v122
    %v457 = vunpack.c.h.b16 %v122
    %v458 = vunpack.c.l.b16 %v123
    %v459 = vunpack.c.h.b16 %v123
    %v460 = vunpack.c.l.b16 %v124
    %v461 = vunpack.c.h.b16 %v124
    %v462 = vunpack.c.l.b16 %v125
    %v463 = vunpack.c.h.b16 %v125
    %v464 = vunpack.c.l.b16 %v126
    %v465 = vunpack.c.h.b16 %v126
    %v466 = vunpack.c.l.b16 %v127
    %v467 = vunpack.c.h.b16 %v127
    %v468 = vunpack.c.l.b16 %v128
    %v469 = vunpack.c.h.b16 %v128
    %v470 = vunpack.c.l.b16 %v129
    %v471 = vunpack.c.h.b16 %v129
    %v472 = vunpack.c.l.b16 %v130
    %v473 = vunpack.c.h.b16 %v130
    %v474 = vunpack.c.l.b16 %v131
    %v475 = vunpack.c.h.b16 %v131
    %v476 = vunpack.c.l.b16 %v132
    %v477 = vunpack.c.h.b16 %v132
    %v478 = vunpack.c.l.b16 %v133
    %v479 = vunpack.c.h.b16 %v133
    %v480 = vunpack.c.l.b16 %v134
    %v481 = vunpack.c.h.b16 %v134
    %v482 = vunpack.c.l.b16 %v135
    %v483 = vunpack.c.h.b16 %v135
    %v484 = vunpack.c.l.b16 %v136
    %v485 = vunpack.c.h.b16 %v136
    %v486 = vunpack.c.l.b16 %v137
    %v487 = vunpack.c.h.b16 %v137
    %v488 = vunpack.c.l.b16 %v138
    %v489 = vunpack.c.h.b16 %v138
    %v490 = vunpack.c.l.b16 %v139
    %v491 = vunpack.c.h.b16 %v139
    %v492 = vunpack.c.l.b16 %v140
    %v493 = vunpack.c.h.b16 %v140
    %v494 = vunpack.c.l.b16 %v141
    %v495 = vunpack.c.h.b16 %v141
    %v496 = vunpack.c.l.b16 %v142
    %v497 = vunpack.c.h.b16 %v142
    %v498 = vunpack.c.l.b16 %v143
    %v499 = vunpack.c.h.b16 %v143
    %v500 = vunpack.c.l.b16 %v144
    %v501 = vunpack.c.h.b16 %v144
    %v502 = vunpack.c.l.b16 %v145
    %v503 = vunpack.c.h.b16 %v145
    %v504 = vunpack.c.l.b16 %v146
    %v505 = vunpack.c.h.b16 %v146
    %v506 = vunpack.c.l.b16 %v147
    %v507 = vunpack.c.h.b16 %v147
    %v508 = vunpack.c.l.b16 %v148
    %v509 = vunpack.c.h.b16 %v148
    %v510 = vunpack.c.l.b16 %v149
    %v511 = vunpack.c.h.b16 %v149
    %v512 = vunpack.c.l.b16 %v150
    %v513 = vunpack.c.h.b16 %v150
    %v514 = vunpack.c.l.b16 %v151
    %v515 = vunpack.c.h.b16 %v151
    %v516 = vunpack.c.l.b16 %v152
    %v517 = vunpack.c.h.b16 %v152
    %v518 = vunpack.c.l.b16 %v153
    %v519 = vunpack.c.h.b16 %v153
    %v520 = vunpack.c.l.b16 %v154
    %v521 = vunpack.c.h.b16 %v154
    %v522 = vunpack.c.l.b16 %v155
    %v523 = vunpack.c.h.b16 %v155
    %v524 = vunpack.c.l.b16 %v156
    %v525 = vunpack.c.h.b16 %v156
    %v526 = vunpack.c.l.b16 %v157
    %v527 = vunpack.c.h.b16 %v157
    %v528 = vunpack.c.l.b16 %v158
    %v529 = vunpack.c.h.b16 %v158
    %v530 = vunpack.c.l.b16 %v159
    %v531 = vunpack.c.h.b16 %v159
    %v532 = vunpack.c.l.b16 %v160
    %v533 = vunpack.c.h.b16 %v160
    %v534 = vunpack.c.l.b16 %v161
    %v535 = vunpack.c.h.b16 %v161
    %v536 = vunpack.c.l.b16 %v162
    %v537 = vunpack.c.h.b16 %v162
    %v538 = vunpack.c.l.b16 %v163
    %v539 = vunpack.c.h.b16 %v163
    %v540 = vunpack.c.l.b16 %v164
    %v541 = vunpack.c.h.b16 %v164
    %v542 = vunpack.c.l.b16 %v165
    %v543 = vunpack.c.h.b16 %v165
    %v544 = vunpack.c.l.b16 %v166
    %v545 = vunpack.c.h.b16 %v166
    %v546 = vunpack.c.l.b16 %v167
    %v547 = vunpack.c.h.b16 %v167
    %v548 = vunpack.c.l.b16 %v168
    %v549 = vunpack.c.h.b16 %v168
    %v550 = vunpack.c.l.b16 %v169
    %v551 = vunpack.c.h.b16 %v169
    %v552 = vunpack.c.l.b16 %v170
    %v553 = vunpack.c.h.b16 %v170
    %v554 = vunpack.c.l.b16 %v171
    %v555 = vunpack.c.h.b16 %v171
    %v556 = vunpack.c.l.b16 %v172
    %v557 = vunpack.c.h.b16 %v172
    %v558 = vunpack.c.l.b16 %v173
    %v559 = vunpack.c.h.b16 %v173
    %v560 = vunpack.c.l.b16 %v174
    %v561 = vunpack.c.h.b16 %v174
    %v562 = vunpack.c.l.b16 %v175
    %v563 = vunpack.c.h.b16 %v175
    %v564 = vunpack.c.l.b16 %v176
    %v565 = vunpack.c.h.b16 %v176
    %v566 = vunpack.c.l.b16 %v177
    %v567 = vunpack.c.h.b16 %v177
    %v568 = vunpack.c.l.b16 %v178
    %v569 = vunpack.c.h.b16 %v178
    %v570 = vunpack.c.l.b16 %v179
    %v571 = vunpack.c.h.b16 %v179
    %v572 = vunpack.c.l.b16 %v180
    %v573 = vunpack.c.h.b16 %v180
    %v574 = vunpack.c.l.b16 %v181
    %v575 = vunpack.c.h.b16 %v181
    %v576 = vunpack.c.l.b16 %v182
    %v577 = vunpack.c.h.b16 %v182
    %v578 = vunpack.c.l.b16 %v183
    %v579 = vunpack.c.h.b16 %v183
    %v580 = vunpack.c.l.b16 %v184
    %v581 = vunpack.c.h.b16 %v184
    %v582 = vunpack.c.l.b16 %v185
    %v583 = vunpack.c.h.b16 %v185
    %v584 = vunpack.c.l.b16 %v186
    %v585 = vunpack.c.h.b16 %v186
    %v586 = vunpack.c.l.b16 %v187
    %v587 = vunpack.c.h.b16 %v187
    %v588 = vunpack.c.l.b16 %v188
    %v589 = vunpack.c.h.b16 %v188
    %v590 = vunpack.c.l.b16 %v189
    %v591 = vunpack.c.h.b16 %v189
    %v592 = vunpack.c.l.b16 %v190
    %v593 = vunpack.c.h.b16 %v190
    %v594 = vunpack.c.l.b16 %v191
    %v595 = vunpack.c.h.b16 %v191
    %v596 = vunpack.c.l.b16 %v192
    %v597 = vunpack.c.h.b16 %v192
    %v598 = vunpack.c.l.b16 %v193
    %v599 = vunpack.c.h.b16 %v193
    %v600 = vunpack.c.l.b16 %v194
    %v601 = vunpack.c.h.b16 %v194
    %v602 = vunpack.c.l.b16 %v195
    %v603 = vunpack.c.h.b16 %v195
    %v604 = vunpack.c.l.b16 %v196
    %v605 = vunpack.c.h.b16 %v196
    %v606 = vunpack.c.l.b16 %v197
    %v607 = vunpack.c.h.b16 %v197
    %v608 = vunpack.c.l.b16 %v198
    %v609 = vunpack.c.h.b16 %v198
    %v610 = vunpack.c.l.b16 %v199
    %v611 = vunpack.c.h.b16 %v199
    %v612 = vunpack.c.l.b16 %v200
    %v613 = vunpack.c.h.b16 %v200
    %v614 = vunpack.c.l.b16 %v201
    %v615 = vunpack.c.h.b16 %v201
    %v616 = vunpack.c.l.b16 %v202
    %v617 = vunpack.c.h.b16 %v202
    %v618 = vunpack.c.l.b16 %v203
    %v619 = vunpack.c.h.b16 %v203
    %v620 = vunpack.c.l.b16 %v204
    %v621 = vunpack.c.h.b16 %v204
    %v622 = vunpack.c.l.b16 %v205
    %v623 = vunpack.c.h.b16 %v205
    %v624 = vunpack.c.l.b16 %v206
    %v625 = vunpack.c.h.b16 %v206
    %v626 = vunpack.c.l.b16 %v207
    %v627 = vunpack.c.h.b16 %v207
    %v628 = vunpack.c.l.b16 %v208
    %v629 = vunpack.c.h.b16 %v208
    %v630 = vunpack.c.l.b16 %v209
    %v631 = vunpack.c.h.b16 %v209
    %v632 = vunpack.c.l.b16 %v210
    %v633 = vunpack.c.h.b16 %v210
    %v634 = vunpack.c.l.b16 %v211
    %v635 = vunpack.c.h.b16 %v211
    %v636 = vunpack.c.l.b16 %v212
    %v637 = vunpack.c.h.b16 %v212
    %v638 = vunpack.c.l.b16 %v213
    %v639 = vunpack.c.h.b16 %v213
    %v640 = vunpack.c.l.b16 %v214
    %v641 = vunpack.c.h.b16 %v214
    %v642 = vunpack.c.l.b16 %v215
    %v643 = vunpack.c.h.b16 %v215
    %v644 = vunpack.c.l.b16 %v216
    %v645 = vunpack.c.h.b16 %v216
    %v646 = vunpack.c.l.b16 %v217
    %v647 = vunpack.c.h.b16 %v217
    %v648 = vunpack.c.l.b16 %v218
    %v649 = vunpack.c.h.b16 %v218
    %v650 = vunpack.c.l.b16 %v219
    %v651 = vunpack.c.h.b16 %v219
    %v652 = vunpack.c.l.b16 %v220
    %v653 = vunpack.c.h.b16 %v220
    %v654 = vunpack.c.l.b16 %v221
    %v655 = vunpack.c.h.b16 %v221
    %v656 = vunpack.c.l.b16 %v222
    %v657 = vunpack.c.h.b16 %v222
    %v658 = vunpack.c.l.b16 %v223
    %v659 = vunpack.c.h.b16 %v223
    %v660 = vpack.c.b16 %v412, %v404
    %v661 = vpack.c.b16 %v413, %v405
    %v662 = vpack.c.b16 %v414, %v406
    %v663 = vpack.c.b16 %v415, %v407
    %v664 = vpack.c.b16 %v416, %v408
    %v665 = vpack.c.b16 %v417, %v409
    %v666 = vpack.c.b16 %v418, %v410
    %v667 = vpack.c.b16 %v419, %v411
    %v668 = vpack.c.b16 %v428, %v420
    %v669 = vpack.c.b16 %v429, %v421
    %v670 = vpack.c.b16 %v430, %v422
    %v671 = vpack.c.b16 %v431, %v423
    %v672 = vpack.c.b16 %v432, %v424
    %v673 = vpack.c.b16 %v433, %v425
    %v674 = vpack.c.b16 %v434, %v426
    %v675 = vpack.c.b16 %v435, %v427
    %v676 = vpack.c.b16 %v444, %v436
    %v677 = vpack.c.b16 %v445, %v437
    %v678 = vpack.c.b16 %v446, %v438
    %v679 = vpack.c.b16 %v447, %v439
    %v680 = vpack.c.b16 %v448, %v440
    %v681 = vpack.c.b16 %v449, %v441
    %v682 = vpack.c.b16 %v450, %v442
    %v683 = vpack.c.b16 %v451, %v443
    %v684 = vpack.c.b16 %v460, %v452
    %v685 = vpack.c.b16 %v461, %v453
    %v686 = vpack.c.b16 %v462, %v454
    %v687 = vpack.c.b16 %v463, %v455
    %v688 = vpack.c.b16 %v464, %v456
    %v689 = vpack.c.b16 %v465, %v457
    %v690 = vpack.c.b16 %v466, %v458
    %v691 = vpack.c.b16 %v467, %v459
    %v692 = vpack.c.b16 %v476, %v468
    %v693 = vpack.c.b16 %v477, %v469
    %v694 = vpack.c.b16 %v478, %v470
    %v695 = vpack.c.b16 %v479, %v471
    %v696 = vpack.c.b16 %v480, %v472
    %v697 = vpack.c.b16 %v481, %v473
    %v698 = vpack.c.b16 %v482, %v474
    %v699 = vpack.c.b16 %v483, %v475
    %v700 = vpack.c.b16 %v492, %v484
    %v701 = vpack.c.b16 %v493, %v485
    %v702 = vpack.c.b16 %v494, %v486
    %v703 = vpack.c.b16 %v495, %v487
    %v704 = vpack.c.b16 %v496, %v488
    %v705 = vpack.c.b16 %v497, %v489
    %v706 = vpack.c.b16 %v498, %v490
    %v707 = vpack.c.b16 %v499, %v491
    %v708 = vpack.c.b16 %v508, %v500
    %v709 = vpack.c.b16 %v509, %v501
    %v710 = vpack.c.b16 %v510, %v502
    %v711 = vpack.c.b16 %v511, %v503
    %v712 = vpack.c.b16 %v512, %v504
    %v713 = vpack.c.b16 %v513, %v505
    %v714 = vpack.c.b16 %v514, %v506
    %v715 = vpack.c.b16 %v515, %v507
    %v716 = vpack.c.b16 %v524, %v516
    %v717 = vpack.c.b16 %v525, %v517
    %v718 = vpack.c.b16 %v526, %v518
    %v719 = vpack.c.b16 %v527, %v519
    %v720 = vpack.c.b16 %v528, %v520
    %v721 = vpack.c.b16 %v529, %v521
    %v722 = vpack.c.b16 %v530, %v522
    %v723 = vpack.c.b16 %v531, %v523
    %v724 = vpack.c.b16 %v540, %v532
    %v725 = vpack.c.b16 %v541, %v533
    %v726 = vpack.c.b16 %v542, %v534
    %v727 = vpack.c.b16 %v543, %v535
    %v728 = vpack.c.b16 %v544, %v536
    %v729 = vpack.c.b16 %v545, %v537
    %v730 = vpack.c.b16 %v546, %v538
    %v731 = vpack.c.b16 %v547, %v539
    %v732 = vpack.c.b16 %v556, %v548
    %v733 = vpack.c.b16 %v557, %v549
    %v734 = vpack.c.b16 %v558, %v550
    %v735 = vpack.c.b16 %v559, %v551
    %v736 = vpack.c.b16 %v560, %v552
    %v737 = vpack.c.b16 %v561, %v553
    %v738 = vpack.c.b16 %v562, %v554
    %v739 = vpack.c.b16 %v563, %v555
    %v740 = vpack.c.b16 %v572, %v564
    %v741 = vpack.c.b16 %v573, %v565
    %v742 = vpack.c.b16 %v574, %v566
    %v743 = vpack.c.b16 %v575, %v567
    %v744 = vpack.c.b16 %v576, %v568
    %v745 = vpack.c.b16 %v577, %v569
    %v746 = vpack.c.b16 %v578, %v570
    %v747 = vpack.c.b16 %v579, %v571
    %v748 = vpack.c.b16 %v588, %v580
    %v749 = vpack.c.b16 %v589, %v581
    %v750 = vpack.c.b16 %v590, %v582
    %v751 = vpack.c.b16 %v591, %v583
    %v752 = vpack.c.b16 %v592, %v584
    %v753 = vpack.c.b16 %v593, %v585
    %v754 = vpack.c.b16 %v594, %v586
    %v755 = vpack.c.b16 %v595, %v587
    %v756 = vpack.c.b16 %v604, %v596
    %v757 = vpack.c.b16 %v605, %v597
    %v758 = vpack.c.b16 %v606, %v598
    %v759 = vpack.c.b16 %v607, %v599
    %v760 = vpack.c.b16 %v608, %v600
    %v761 = vpack.c.b16 %v609, %v601
    %v762 = vpack.c.b16 %v610, %v602
    %v763 = vpack.c.b16 %v611, %v603
    %v764 = vpack.c.b16 %v620, %v612
    %v765 = vpack.c.b16 %v621, %v613
    %v766 = vpack.c.b16 %v622, %v614
    %v767 = vpack.c.b16 %v623, %v615
    %v768 = vpack.c.b16 %v624, %v616
    %v769 = vpack.c.b16 %v625, %v617
    %v770 = vpack.c.b16 %v626, %v618
    %v771 = vpack.c.b16 %v627, %v619
    %v772 = vpack.c.b16 %v636, %v628
    %v773 = vpack.c.b16 %v637, %v629
    %v774 = vpack.c.b16 %v638, %v630
    %v775 = vpack.c.b16 %v639, %v631
    %v776 = vpack.c.b16 %v640, %v632
    %v777 = vpack.c.b16 %v641, %v633
    %v778 = vpack.c.b16 %v642, %v634
    %v779 = vpack.c.b16 %v643, %v635
    %v780 = vpack.c.b16 %v652, %v644
    %v781 = vpack.c.b16 %v653, %v645
    %v782 = vpack.c.b16 %v654, %v646
    %v783 = vpack.c.b16 %v655, %v647
    %v784 = vpack.c.b16 %v656, %v648
    %v785 = vpack.c.b16 %v657, %v649
    %v786 = vpack.c.b16 %v658, %v650
    %v787 = vpack.c.b16 %v659, %v651
    %916 = vmatprep.subr.bf16.mxu0 %v661
    %917 = vmatpush1.bf16.msra.mxu0 %v660
    %918 = vmatprep.subr.bf16.mxu0 %v669
    %919 = vmatpush1.bf16.msra.mxu0 %v668
    %920 = vmatprep.subr.bf16.mxu0 %v677
    %921 = vmatpush1.bf16.msra.mxu0 %v676
    %922 = vmatprep.subr.bf16.mxu0 %v685
    %923 = vmatpush1.bf16.msra.mxu0 %v684
    %924 = vmatprep.subr.bf16.mxu0 %v693
    %925 = vmatpush1.bf16.msra.mxu0 %v692
    %926 = vmatprep.subr.bf16.mxu0 %v701
    %927 = vmatpush1.bf16.msra.mxu0 %v700
    %928 = vmatprep.subr.bf16.mxu0 %v709
    %929 = vmatpush1.bf16.msra.mxu0 %v708
    %930 = vmatprep.subr.bf16.mxu0 %v717
    %931 = vmatpush1.bf16.msra.mxu0 %v716
    %932 = vmatprep.subr.bf16.mxu0 %v725
    %933 = vmatpush1.bf16.msra.mxu0 %v724
    %934 = vmatprep.subr.bf16.mxu0 %v733
    %935 = vmatpush1.bf16.msra.mxu0 %v732
    %936 = vmatprep.subr.bf16.mxu0 %v741
    %937 = vmatpush1.bf16.msra.mxu0 %v740
    %938 = vmatprep.subr.bf16.mxu0 %v749
    %939 = vmatpush1.bf16.msra.mxu0 %v748
    %940 = vmatprep.subr.bf16.mxu0 %v757
    %941 = vmatpush1.bf16.msra.mxu0 %v756
    %942 = vmatprep.subr.bf16.mxu0 %v765
    %943 = vmatpush1.bf16.msra.mxu0 %v764
    %944 = vmatprep.subr.bf16.mxu0 %v773
    %945 = vmatpush1.bf16.msra.mxu0 %v772
    %946 = vmatprep.subr.bf16.mxu0 %v781
    %947 = vmatpush1.bf16.msra.mxu0 %v780
    %948 = vmatprep.mubr.bf16.mxu0 %v273
    %949 = vmatmul.mubr.bf16.gmra.mrb[0].mxu0 %v272
    %v950 = vpop.f32.mrb[0].mxu0
    %v951 = vadd.f32 %v229, %v950
    %v952 = vpop.f32.mrb[0].mxu0
    %v953 = vadd.f32 %v233, %v952
    %v954 = vpop.f32.mrb[0].mxu0
    %v955 = vadd.f32 %v229, %v954
    %v956 = vpop.f32.mrb[0].mxu0
    %v957 = vadd.f32 %v233, %v956
    %958 = vdwg.mxu0
    %959 = vmatprep.subr.bf16.mxu0 %v663
    %960 = vmatpush1.bf16.msra.mxu0 %v662
    %961 = vmatprep.subr.bf16.mxu0 %v671
    %962 = vmatpush1.bf16.msra.mxu0 %v670
    %963 = vmatprep.subr.bf16.mxu0 %v679
    %964 = vmatpush1.bf16.msra.mxu0 %v678
    %965 = vmatprep.subr.bf16.mxu0 %v687
    %966 = vmatpush1.bf16.msra.mxu0 %v686
    %967 = vmatprep.subr.bf16.mxu0 %v695
    %968 = vmatpush1.bf16.msra.mxu0 %v694
    %969 = vmatprep.subr.bf16.mxu0 %v703
    %970 = vmatpush1.bf16.msra.mxu0 %v702
    %971 = vmatprep.subr.bf16.mxu0 %v711
    %972 = vmatpush1.bf16.msra.mxu0 %v710
    %973 = vmatprep.subr.bf16.mxu0 %v719
    %974 = vmatpush1.bf16.msra.mxu0 %v718
    %975 = vmatprep.subr.bf16.mxu0 %v727
    %976 = vmatpush1.bf16.msra.mxu0 %v726
    %977 = vmatprep.subr.bf16.mxu0 %v735
    %978 = vmatpush1.bf16.msra.mxu0 %v734
    %979 = vmatprep.subr.bf16.mxu0 %v743
    %980 = vmatpush1.bf16.msra.mxu0 %v742
    %981 = vmatprep.subr.bf16.mxu0 %v751
    %982 = vmatpush1.bf16.msra.mxu0 %v750
    %983 = vmatprep.subr.bf16.mxu0 %v759
    %984 = vmatpush1.bf16.msra.mxu0 %v758
    %985 = vmatprep.subr.bf16.mxu0 %v767
    %986 = vmatpush1.bf16.msra.mxu0 %v766
    %987 = vmatprep.subr.bf16.mxu0 %v775
    %988 = vmatpush1.bf16.msra.mxu0 %v774
    %989 = vmatprep.subr.bf16.mxu0 %v783
    %990 = vmatpush1.bf16.msra.mxu0 %v782
    %991 = vmatprep.mubr.bf16.mxu0 %v273
    %992 = vmatmul.mubr.bf16.gmra.mrb[0].mxu0 %v272
    %v993 = vpop.f32.mrb[0].mxu0
    %v994 = vadd.f32 %v237, %v993
    %v995 = vpop.f32.mrb[0].mxu0
    %v996 = vadd.f32 %v241, %v995
    %v997 = vpop.f32.mrb[0].mxu0
    %v998 = vadd.f32 %v237, %v997
    %v999 = vpop.f32.mrb[0].mxu0
    %v1000 = vadd.f32 %v241, %v999
    %1001 = vdwg.mxu0
    %1002 = vmatprep.subr.bf16.mxu0 %v665
    %1003 = vmatpush1.bf16.msra.mxu0 %v664
    %1004 = vmatprep.subr.bf16.mxu0 %v673
    %1005 = vmatpush1.bf16.msra.mxu0 %v672
    %1006 = vmatprep.subr.bf16.mxu0 %v681
    %1007 = vmatpush1.bf16.msra.mxu0 %v680
    %1008 = vmatprep.subr.bf16.mxu0 %v689
    %1009 = vmatpush1.bf16.msra.mxu0 %v688
    %1010 = vmatprep.subr.bf16.mxu0 %v697
    %1011 = vmatpush1.bf16.msra.mxu0 %v696
    %1012 = vmatprep.subr.bf16.mxu0 %v705
    %1013 = vmatpush1.bf16.msra.mxu0 %v704
    %1014 = vmatprep.subr.bf16.mxu0 %v713
    %1015 = vmatpush1.bf16.msra.mxu0 %v712
    %1016 = vmatprep.subr.bf16.mxu0 %v721
    %1017 = vmatpush1.bf16.msra.mxu0 %v720
    %1018 = vmatprep.subr.bf16.mxu0 %v729
    %1019 = vmatpush1.bf16.msra.mxu0 %v728
    %1020 = vmatprep.subr.bf16.mxu0 %v737
    %1021 = vmatpush1.bf16.msra.mxu0 %v736
    %1022 = vmatprep.subr.bf16.mxu0 %v745
    %1023 = vmatpush1.bf16.msra.mxu0 %v744
    %1024 = vmatprep.subr.bf16.mxu0 %v753
    %1025 = vmatpush1.bf16.msra.mxu0 %v752
    %1026 = vmatprep.subr.bf16.mxu0 %v761
    %1027 = vmatpush1.bf16.msra.mxu0 %v760
    %1028 = vmatprep.subr.bf16.mxu0 %v769
    %1029 = vmatpush1.bf16.msra.mxu0 %v768
    %1030 = vmatprep.subr.bf16.mxu0 %v777
    %1031 = vmatpush1.bf16.msra.mxu0 %v776
    %1032 = vmatprep.subr.bf16.mxu0 %v785
    %1033 = vmatpush1.bf16.msra.mxu0 %v784
    %1034 = vmatprep.mubr.bf16.mxu0 %v273
    %1035 = vmatmul.mubr.bf16.gmra.mrb[0].mxu0 %v272
    %v1036 = vpop.f32.mrb[0].mxu0
    %v1037 = vadd.f32 %v245, %v1036
    %v1038 = vpop.f32.mrb[0].mxu0
    %v1039 = vadd.f32 %v249, %v1038
    %v1040 = vpop.f32.mrb[0].mxu0
    %v1041 = vadd.f32 %v245, %v1040
    %v1042 = vpop.f32.mrb[0].mxu0
    %v1043 = vadd.f32 %v249, %v1042
    %1044 = vdwg.mxu0
    %1045 = vmatprep.subr.bf16.mxu0 %v667
    %1046 = vmatpush1.bf16.msra.mxu0 %v666
    %1047 = vmatprep.subr.bf16.mxu0 %v675
    %1048 = vmatpush1.bf16.msra.mxu0 %v674
    %1049 = vmatprep.subr.bf16.mxu0 %v683
    %1050 = vmatpush1.bf16.msra.mxu0 %v682
    %1051 = vmatprep.subr.bf16.mxu0 %v691
    %1052 = vmatpush1.bf16.msra.mxu0 %v690
    %1053 = vmatprep.subr.bf16.mxu0 %v699
    %1054 = vmatpush1.bf16.msra.mxu0 %v698
    %1055 = vmatprep.subr.bf16.mxu0 %v707
    %1056 = vmatpush1.bf16.msra.mxu0 %v706
    %1057 = vmatprep.subr.bf16.mxu0 %v715
    %1058 = vmatpush1.bf16.msra.mxu0 %v714
    %1059 = vmatprep.subr.bf16.mxu0 %v723
    %1060 = vmatpush1.bf16.msra.mxu0 %v722
    %1061 = vmatprep.subr.bf16.mxu0 %v731
    %1062 = vmatpush1.bf16.msra.mxu0 %v730
    %1063 = vmatprep.subr.bf16.mxu0 %v739
    %1064 = vmatpush1.bf16.msra.mxu0 %v738
    %1065 = vmatprep.subr.bf16.mxu0 %v747
    %1066 = vmatpush1.bf16.msra.mxu0 %v746
    %1067 = vmatprep.subr.bf16.mxu0 %v755
    %1068 = vmatpush1.bf16.msra.mxu0 %v754
    %1069 = vmatprep.subr.bf16.mxu0 %v763
    %1070 = vmatpush1.bf16.msra.mxu0 %v762
    %1071 = vmatprep.subr.bf16.mxu0 %v771
    %1072 = vmatpush1.bf16.msra.mxu0 %v770
    %1073 = vmatprep.subr.bf16.mxu0 %v779
    %1074 = vmatpush1.bf16.msra.mxu0 %v778
    %1075 = vmatprep.subr.bf16.mxu0 %v787
    %1076 = vmatpush1.bf16.msra.mxu0 %v786
    %1077 = vmatprep.mubr.bf16.mxu0 %v273
    %1078 = vmatmul.mubr.bf16.gmra.mrb[0].mxu0 %v272
    %v1079 = vpop.f32.mrb[0].mxu0
    %v1080 = vadd.f32 %v253, %v1079
    %v1081 = vpop.f32.mrb[0].mxu0
    %v1082 = vadd.f32 %v257, %v1081
    %v1083 = vpop.f32.mrb[0].mxu0
    %v1084 = vadd.f32 %v253, %v1083
    %v1085 = vpop.f32.mrb[0].mxu0
    %v1086 = vadd.f32 %v257, %v1085
    %1087 = vdwg.mxu0
    %v1088 = vmul.f32 %v951, 0.5
    %v1089 = vmul.f32 %v953, 0.5
    %v1090 = vmul.f32 %v994, 0.5
    %v1091 = vmul.f32 %v996, 0.5
    %v1092 = vmul.f32 %v1037, 0.5
    %v1093 = vmul.f32 %v1039, 0.5
    %v1094 = vmul.f32 %v1080, 0.5
    %v1095 = vmul.f32 %v1082, 0.5
    %v1096 = vmul.f32 %v955, 0.5
    %v1097 = vmul.f32 %v957, 0.5
    %v1098 = vmul.f32 %v998, 0.5
    %v1099 = vmul.f32 %v1000, 0.5
    %v1100 = vmul.f32 %v1041, 0.5
    %v1101 = vmul.f32 %v1043, 0.5
    %v1102 = vmul.f32 %v1084, 0.5
    %v1103 = vmul.f32 %v1086, 0.5
    %v1104 = vtanh.pop %v1088
    %v1105 = vtanh.pop %v1089
    %v1106 = vtanh.pop %v1090
    %v1107 = vtanh.pop %v1091
    %v1108 = vtanh.pop %v1092
    %v1109 = vtanh.pop %v1093
    %v1110 = vtanh.pop %v1094
    %v1111 = vtanh.pop %v1095
    %v1112 = vtanh.pop %v1096
    %v1113 = vtanh.pop %v1097
    %v1114 = vtanh.pop %v1098
    %v1115 = vtanh.pop %v1099
    %v1116 = vtanh.pop %v1100
    %v1117 = vtanh.pop %v1101
    %v1118 = vtanh.pop %v1102
    %v1119 = vtanh.pop %v1103
    %v1120 = vmul.f32 %v1104, 0.5
    %v1121 = vmul.f32 %v1105, 0.5
    %v1122 = vmul.f32 %v1106, 0.5
    %v1123 = vmul.f32 %v1107, 0.5
    %v1124 = vmul.f32 %v1108, 0.5
    %v1125 = vmul.f32 %v1109, 0.5
    %v1126 = vmul.f32 %v1110, 0.5
    %v1127 = vmul.f32 %v1111, 0.5
    %v1128 = vmul.f32 %v1112, 0.5
    %v1129 = vmul.f32 %v1113, 0.5
    %v1130 = vmul.f32 %v1114, 0.5
    %v1131 = vmul.f32 %v1115, 0.5
    %v1132 = vmul.f32 %v1116, 0.5
    %v1133 = vmul.f32 %v1117, 0.5
    %v1134 = vmul.f32 %v1118, 0.5
    %v1135 = vmul.f32 %v1119, 0.5
    %v1136 = vadd.f32 %v1120, 0.5
    %v1137 = vadd.f32 %v1121, 0.5
    %v1138 = vadd.f32 %v1122, 0.5
    %v1139 = vadd.f32 %v1123, 0.5
    %v1140 = vadd.f32 %v1124, 0.5
    %v1141 = vadd.f32 %v1125, 0.5
    %v1142 = vadd.f32 %v1126, 0.5
    %v1143 = vadd.f32 %v1127, 0.5
    %v1144 = vadd.f32 %v1128, 0.5
    %v1145 = vadd.f32 %v1129, 0.5
    %v1146 = vadd.f32 %v1130, 0.5
    %v1147 = vadd.f32 %v1131, 0.5
    %v1148 = vadd.f32 %v1132, 0.5
    %v1149 = vadd.f32 %v1133, 0.5
    %v1150 = vadd.f32 %v1134, 0.5
    %v1151 = vadd.f32 %v1135, 0.5
    %v1152 = vmax.f32 %v1136, %v1138
    %v1153 = vmax.f32 %v1137, %v1139
    %v1154 = vmax.f32 %v1144, %v1146
    %v1155 = vmax.f32 %v1145, %v1147
    %v1156 = vmax.f32 %v1140, %v1142
    %v1157 = vmax.f32 %v1141, %v1143
    %v1158 = vmax.f32 %v1148, %v1150
    %v1159 = vmax.f32 %v1149, %v1151
    %v1160 = vmax.f32 %v1152, %v1156
    %v1161 = vmax.f32 %v1153, %v1157
    %v1162 = vmax.f32 %v1154, %v1158
    %v1163 = vmax.f32 %v1155, %v1159
    %v1164 = vpack.c.bf16 %v1162, %v1160
    %v1165 = vpack.c.bf16 %v1163, %v1161
    %v1166 = vld [vmem:[#allocation8] sm:$0xf]
    %v1167 = vld [vmem:[#allocation8 + $0x4] sm:$0xf]
    %v1168 = vld [vmem:[#allocation8 + $0x8] sm:$0xf]
    %v1169 = vld [vmem:[#allocation8 + $0xc] sm:$0xf]
    %v1170 = vld [vmem:[#allocation8 + $0x10] sm:$0xf]
    %v1171 = vld [vmem:[#allocation8 + $0x14] sm:$0xf]
    %v1172 = vld [vmem:[#allocation8 + $0x18] sm:$0xf]
    %v1173 = vld [vmem:[#allocation8 + $0x1c] sm:$0xf]
    %v1174 = vld [vmem:[#allocation8 + $0x20] sm:$0xf]
    %v1175 = vld [vmem:[#allocation8 + $0x24] sm:$0xf]
    %v1176 = vld [vmem:[#allocation8 + $0x28] sm:$0xf]
    %v1177 = vld [vmem:[#allocation8 + $0x2c] sm:$0xf]
    %v1178 = vld [vmem:[#allocation8 + $0x30] sm:$0xf]
    %v1179 = vld [vmem:[#allocation8 + $0x34] sm:$0xf]
    %v1180 = vld [vmem:[#allocation8 + $0x38] sm:$0xf]
    %v1181 = vld [vmem:[#allocation8 + $0x3c] sm:$0xf]
    %v1182 = vld [vmem:[#allocation8 + $0x40] sm:$0xf]
    %v1183 = vld [vmem:[#allocation8 + $0x44] sm:$0xf]
    %v1184 = vld [vmem:[#allocation8 + $0x48] sm:$0xf]
    %v1185 = vld [vmem:[#allocation8 + $0x4c] sm:$0xf]
    %v1186 = vld [vmem:[#allocation8 + $0x50] sm:$0xf]
    %v1187 = vld [vmem:[#allocation8 + $0x54] sm:$0xf]
    %v1188 = vld [vmem:[#allocation8 + $0x58] sm:$0xf]
    %v1189 = vld [vmem:[#allocation8 + $0x5c] sm:$0xf]
    %v1190 = vld [vmem:[#allocation8 + $0x60] sm:$0xf]
    %v1191 = vld [vmem:[#allocation8 + $0x64] sm:$0xf]
    %v1192 = vld [vmem:[#allocation8 + $0x68] sm:$0xf]
    %v1193 = vld [vmem:[#allocation8 + $0x6c] sm:$0xf]
    %v1194 = vld [vmem:[#allocation8 + $0x70] sm:$0xf]
    %v1195 = vld [vmem:[#allocation8 + $0x74] sm:$0xf]
    %v1196 = vld [vmem:[#allocation8 + $0x78] sm:$0xf]
    %v1197 = vld [vmem:[#allocation8 + $0x7c] sm:$0xf]
    %v1198 = vld [vmem:[%s4] sm:$0x1]
    %v1200 = vlaneseq
    %v1201 = vshrl.u32 %v1200, 7
    %v1202 = vsub.s32 0, %v1201
    %v1203 = vrot.slane %v1198, %v1202
    %v1237 = vunpack.c.l.b16 %v1166
    %v1238 = vunpack.c.l.b16 %v1167
    %v1239 = vunpack.c.l.b16 %v1168
    %v1240 = vunpack.c.l.b16 %v1169
    %v1241 = vunpack.c.l.b16 %v1170
    %v1242 = vunpack.c.l.b16 %v1171
    %v1243 = vunpack.c.l.b16 %v1172
    %v1244 = vunpack.c.l.b16 %v1173
    %v1245 = vunpack.c.l.b16 %v1174
    %v1246 = vunpack.c.l.b16 %v1175
    %v1247 = vunpack.c.l.b16 %v1176
    %v1248 = vunpack.c.l.b16 %v1177
    %v1249 = vunpack.c.l.b16 %v1178
    %v1250 = vunpack.c.l.b16 %v1179
    %v1251 = vunpack.c.l.b16 %v1180
    %v1252 = vunpack.c.l.b16 %v1181
    %v1253 = vunpack.c.l.b16 %v1182
    %v1254 = vunpack.c.l.b16 %v1183
    %v1255 = vunpack.c.l.b16 %v1184
    %v1256 = vunpack.c.l.b16 %v1185
    %v1257 = vunpack.c.l.b16 %v1186
    %v1258 = vunpack.c.l.b16 %v1187
    %v1259 = vunpack.c.l.b16 %v1188
    %v1260 = vunpack.c.l.b16 %v1189
    %v1261 = vunpack.c.l.b16 %v1190
    %v1262 = vunpack.c.l.b16 %v1191
    %v1263 = vunpack.c.l.b16 %v1192
    %v1264 = vunpack.c.l.b16 %v1193
    %v1265 = vunpack.c.l.b16 %v1194
    %v1266 = vunpack.c.l.b16 %v1195
    %v1267 = vunpack.c.l.b16 %v1196
    %v1268 = vunpack.c.l.b16 %v1197
    %v1269 = vpack.c.b16 %v1238, %v1237
    %v1270 = vpack.c.b16 %v1240, %v1239
    %v1271 = vpack.c.b16 %v1242, %v1241
    %v1272 = vpack.c.b16 %v1244, %v1243
    %v1273 = vpack.c.b16 %v1246, %v1245
    %v1274 = vpack.c.b16 %v1248, %v1247
    %v1275 = vpack.c.b16 %v1250, %v1249
    %v1276 = vpack.c.b16 %v1252, %v1251
    %v1277 = vpack.c.b16 %v1254, %v1253
    %v1278 = vpack.c.b16 %v1256, %v1255
    %v1279 = vpack.c.b16 %v1258, %v1257
    %v1280 = vpack.c.b16 %v1260, %v1259
    %v1281 = vpack.c.b16 %v1262, %v1261
    %v1282 = vpack.c.b16 %v1264, %v1263
    %v1283 = vpack.c.b16 %v1266, %v1265
    %v1284 = vpack.c.b16 %v1268, %v1267
    %1301 = vmatprep.subr.bf16.mxu0 0
    %1302 = vmatpush1.bf16.msra.mxu0 %v1269
    %1303 = vmatprep.subr.bf16.mxu0 0
    %1304 = vmatpush1.bf16.msra.mxu0 %v1270
    %1305 = vmatprep.subr.bf16.mxu0 0
    %1306 = vmatpush1.bf16.msra.mxu0 %v1271
    %1307 = vmatprep.subr.bf16.mxu0 0
    %1308 = vmatpush1.bf16.msra.mxu0 %v1272
    %1309 = vmatprep.subr.bf16.mxu0 0
    %1310 = vmatpush1.bf16.msra.mxu0 %v1273
    %1311 = vmatprep.subr.bf16.mxu0 0
    %1312 = vmatpush1.bf16.msra.mxu0 %v1274
    %1313 = vmatprep.subr.bf16.mxu0 0
    %1314 = vmatpush1.bf16.msra.mxu0 %v1275
    %1315 = vmatprep.subr.bf16.mxu0 0
    %1316 = vmatpush1.bf16.msra.mxu0 %v1276
    %1317 = vmatprep.subr.bf16.mxu0 0
    %1318 = vmatpush1.bf16.msra.mxu0 %v1277
    %1319 = vmatprep.subr.bf16.mxu0 0
    %1320 = vmatpush1.bf16.msra.mxu0 %v1278
    %1321 = vmatprep.subr.bf16.mxu0 0
    %1322 = vmatpush1.bf16.msra.mxu0 %v1279
    %1323 = vmatprep.subr.bf16.mxu0 0
    %1324 = vmatpush1.bf16.msra.mxu0 %v1280
    %1325 = vmatprep.subr.bf16.mxu0 0
    %1326 = vmatpush1.bf16.msra.mxu0 %v1281
    %1327 = vmatprep.subr.bf16.mxu0 0
    %1328 = vmatpush1.bf16.msra.mxu0 %v1282
    %1329 = vmatprep.subr.bf16.mxu0 0
    %1330 = vmatpush1.bf16.msra.mxu0 %v1283
    %1331 = vmatprep.subr.bf16.mxu0 0
    %1332 = vmatpush1.bf16.msra.mxu0 %v1284
    %1333 = vmatprep.mubr.bf16.mxu0 %v1165
    %1334 = vmatmul.mubr.bf16.gmra.mrb[0].mxu0 %v1164
    %v1335 = vpop.f32.mrb[0].mxu0
    %v1336 = vadd.f32 %v1203, %v1335
    %v1337 = vpop.f32.mrb[0].mxu0
    %v1338 = vpop.f32.mrb[0].mxu0
    %v1339 = vadd.f32 %v1203, %v1338
    %v1340 = vpop.f32.mrb[0].mxu0
    %1341 = vdwg.mxu0
    %v1342 = vmul.f32 %v1336, 0.5
    %v1343 = vmul.f32 %v1339, 0.5
    %v1344 = vtanh.pop %v1342
    %v1345 = vtanh.pop %v1343
    %v1346 = vmul.f32 %v1344, 0.5
    %v1347 = vmul.f32 %v1345, 0.5
    %v1348 = vadd.f32 %v1346, 0.5
    %v1349 = vadd.f32 %v1347, 0.5
    %1350 = vrot.lane.b32.xlu0 %v1348, 96
    %v1351 = vpop.permute.xlu0 %1350
    %1352 = vrot.lane.b32.xlu0 %v1349, 96
    %v1353 = vpop.permute.xlu0 %1352
    %v1354 = vmax.f32 %v1348, %v1351
    %v1355 = vmax.f32 %v1349, %v1353
    %1356 = vrot.lane.b32.xlu0 %v1354, 112
    %v1357 = vpop.permute.xlu0 %1356
    %1358 = vrot.lane.b32.xlu0 %v1355, 112
    %v1359 = vpop.permute.xlu0 %1358
    %v1360 = vmax.f32 %v1354, %v1357
    %v1361 = vmax.f32 %v1355, %v1359
    %v1362 = vpack.c.bf16 %v1361, %v1360
    %v1363 = vld [vmem:[#allocation10] sm:$0xf]
    %v1364 = vld [vmem:[#allocation10 + $0x4] sm:$0xf]
    %v1365 = vld [vmem:[#allocation10 + $0x8] sm:$0xf]
    %v1366 = vld [vmem:[#allocation10 + $0xc] sm:$0xf]
    %v1367 = vld [vmem:[#allocation10 + $0x10] sm:$0xf]
    %v1368 = vld [vmem:[#allocation10 + $0x14] sm:$0xf]
    %v1369 = vld [vmem:[#allocation10 + $0x18] sm:$0xf]
    %v1370 = vld [vmem:[#allocation10 + $0x1c] sm:$0xf]
    %v1371 = vld [vmem:[#allocation10 + $0x20] sm:$0xf]
    %v1372 = vld [vmem:[#allocation10 + $0x24] sm:$0xf]
    %v1373 = vld [vmem:[#allocation10 + $0x28] sm:$0xf]
    %v1374 = vld [vmem:[#allocation10 + $0x2c] sm:$0xf]
    %v1375 = vld [vmem:[#allocation10 + $0x30] sm:$0xf]
    %v1376 = vld [vmem:[#allocation10 + $0x34] sm:$0xf]
    %v1377 = vld [vmem:[#allocation10 + $0x38] sm:$0xf]
    %v1378 = vld [vmem:[#allocation10 + $0x3c] sm:$0xf]
    %v1379 = vld [vmem:[%s6] sm:$0x1]
    %v1381 = vlaneseq
    %v1382 = vshrl.u32 %v1381, 7
    %v1383 = vsub.s32 0, %v1382
    %v1384 = vrot.slane %v1379, %v1383
    %v1402 = vunpack.c.l.b16 %v1363
    %v1403 = vunpack.c.l.b16 %v1364
    %v1404 = vunpack.c.l.b16 %v1365
    %v1405 = vunpack.c.l.b16 %v1366
    %v1406 = vunpack.c.l.b16 %v1367
    %v1407 = vunpack.c.l.b16 %v1368
    %v1408 = vunpack.c.l.b16 %v1369
    %v1409 = vunpack.c.l.b16 %v1370
    %v1410 = vunpack.c.l.b16 %v1371
    %v1411 = vunpack.c.l.b16 %v1372
    %v1412 = vunpack.c.l.b16 %v1373
    %v1413 = vunpack.c.l.b16 %v1374
    %v1414 = vunpack.c.l.b16 %v1375
    %v1415 = vunpack.c.l.b16 %v1376
    %v1416 = vunpack.c.l.b16 %v1377
    %v1417 = vunpack.c.l.b16 %v1378
    %v1418 = vpack.c.b16 %v1403, %v1402
    %v1419 = vpack.c.b16 %v1405, %v1404
    %v1420 = vpack.c.b16 %v1407, %v1406
    %v1421 = vpack.c.b16 %v1409, %v1408
    %v1422 = vpack.c.b16 %v1411, %v1410
    %v1423 = vpack.c.b16 %v1413, %v1412
    %v1424 = vpack.c.b16 %v1415, %v1414
    %v1425 = vpack.c.b16 %v1417, %v1416
    %1434 = vmatprep.subr.bf16.mxu0 0
    %1435 = vmatpush1.bf16.msra.mxu0 %v1418
    %1436 = vmatprep.subr.bf16.mxu0 0
    %1437 = vmatpush1.bf16.msra.mxu0 %v1419
    %1438 = vmatprep.subr.bf16.mxu0 0
    %1439 = vmatpush1.bf16.msra.mxu0 %v1420
    %1440 = vmatprep.subr.bf16.mxu0 0
    %1441 = vmatpush1.bf16.msra.mxu0 %v1421
    %1442 = vmatprep.subr.bf16.mxu0 0
    %1443 = vmatpush1.bf16.msra.mxu0 %v1422
    %1444 = vmatprep.subr.bf16.mxu0 0
    %1445 = vmatpush1.bf16.msra.mxu0 %v1423
    %1446 = vmatprep.subr.bf16.mxu0 0
    %1447 = vmatpush1.bf16.msra.mxu0 %v1424
    %1448 = vmatprep.subr.bf16.mxu0 0
    %1449 = vmatpush1.bf16.msra.mxu0 %v1425
    %1450 = vmatprep.subr.bf16.mxu0 0
    %1451 = vmatpush1.bf16.msra.mxu0 0
    %1452 = vmatprep.subr.bf16.mxu0 0
    %1453 = vmatpush1.bf16.msra.mxu0 0
    %1454 = vmatprep.subr.bf16.mxu0 0
    %1455 = vmatpush1.bf16.msra.mxu0 0
    %1456 = vmatprep.subr.bf16.mxu0 0
    %1457 = vmatpush1.bf16.msra.mxu0 0
    %1458 = vmatprep.subr.bf16.mxu0 0
    %1459 = vmatpush1.bf16.msra.mxu0 0
    %1460 = vmatprep.subr.bf16.mxu0 0
    %1461 = vmatpush1.bf16.msra.mxu0 0
    %1462 = vmatprep.subr.bf16.mxu0 0
    %1463 = vmatpush1.bf16.msra.mxu0 0
    %1464 = vmatprep.subr.bf16.mxu0 0
    %1465 = vmatpush1.bf16.msra.mxu0 0
    %1466 = vmatprep.mubr.bf16.mxu0 0
    %1467 = vmatmul.mubr.bf16.gmra.mrb[0].mxu0 %v1362
    %v1468 = vpop.f32.mrb[0].mxu0
    %v1469 = vadd.f32 %v1384, %v1468
    %v1470 = vpop.f32.mrb[0].mxu0
    %v1471 = vpop.f32.mrb[0].mxu0
    %v1472 = vadd.f32 %v1384, %v1471
    %v1473 = vpop.f32.mrb[0].mxu0
    %1474 = vdwg.mxu0
    %1475 = vst [vmem:[#allocation11] sm:$0xff] %v1469
    %1476 = vst [vmem:[#allocation11 + $0x8] sm:$0xff] %v1472
    // Predicated region
    $region50: #{tpu_custom_call.1} parent=1 // pred_check
      _
    $region51: #{tpu_custom_call.1} parent=1 // pred_check_branch
      %1478 = sbr.rel (0) target = $region53
    $region52: #{tpu_custom_call.1} parent=1 // pred_region
      %s1480 = ssub.s32 256, 256
      %1481 = vsyncadd [#allocation4], %s1480
      %s1482 = sshll.u32 [#allocation11], 4
      %s1483 = int_to_ptr.vmem [resolvable:$true] %s1482
      %1488 = dma.vmem_to_hbm [thread:$0]  %s1483, 256, %s7, [#allocation4], 128, 128, 8
    $region53: #{tpu_custom_call.1} parent=1 // pred_fallthru
      _
    // Predicated region
    $region54: #{tpu_custom_call.1} parent=1 // pred_check
      _
    $region55: #{tpu_custom_call.1} parent=1 // pred_check_branch
      %1490 = sbr.rel (0) target = $region57
    $region56: #{tpu_custom_call.1} parent=1 // pred_region
      %1491 = dma.done [#allocation4], 256
    $region57: #{tpu_custom_call.1} parent=1 // pred_fallthru
      _
    %1492 = vsyncpa [#allocation3], 1
    %1493 = vsyncpa [#allocation6], 1
    %1494 = vsyncpa [#allocation9], 1
    %1495 = vsyncpa [#allocation4], 1

</llo_original>
